<compile_context>
chip_gen: v7x
topology: tpu7x:2x2x1
jax: 0.10.0
libtpu: 0.0.40
codegen_flags: <defaults>
</compile_context>

<pallas_src>
import functools

import numpy as np
import jax
import jax.numpy as jnp
from jax.experimental import pallas as pl
from jax.experimental.pallas import tpu as pltpu

EPS = 1e-7
TEMP = 0.1
INV_TEMP = 1.0 / TEMP  # 10.0


def concrete_model_kernel(
    wreg_ref, dreg_ref,                               # SMEM (4,) scalars
    lp_ref, invret_ref, u_ref, x_ref,                 # VMEM inputs
    w1_ref, b1_ref, w2_ref, b2_ref, wh_ref, bh_ref,   # VMEM weights
    heads_ref, reg_ref,                               # outputs: VMEM (B,2*out), SMEM (1,1)
    *, in_features, nb_features, out_features,
):
    l0 = in_features
    l1 = l0 + nb_features
    l2 = l1 + nb_features

    # --- all four concrete-dropout retain masks in one shot -----------------
    u = u_ref[...]                                            # (B, in + 3*nb)
    noise_logit = jnp.log((u + EPS) / (1.0 - u + EPS))        # one EUP log, full tile
    # retain = 1 - sigmoid((logit_p + logit_u) / temp) == sigmoid(-z * 10)
    scale = jax.nn.sigmoid(-(lp_ref[...] + noise_logit) * INV_TEMP) * invret_ref[...]

    # --- layer 1 / layer 2 ---------------------------------------------------
    x = x_ref[...]
    h1 = jnp.tanh(
        jnp.dot(x * scale[:, :l0], w1_ref[...], preferred_element_type=jnp.float32)
        + b1_ref[...]
    )
    h2 = jnp.tanh(
        jnp.dot(h1 * scale[:, l0:l1], w2_ref[...], preferred_element_type=jnp.float32)
        + b2_ref[...]
    )

    # --- both heads in one MXU pass: [h_mu | h_lv] @ blockdiag(wmu, wlv) -----
    h_cat = jnp.concatenate([h2 * scale[:, l1:l2], h2 * scale[:, l2:]], axis=1)
    heads_ref[...] = (
        jnp.dot(h_cat, wh_ref[...], preferred_element_type=jnp.float32) + bh_ref[...]
    )

    # --- regularization ------------------------------------------------------
    # Weight term (sum of squares over weight AND bias, per the torch module)
    # computed here; the dropout-entropy term is precomputed (dreg_ref) and the
    # weight_regularizer / (1 - p) factor is prefolded into wreg_ref.
    def ssq(v):
        return jnp.sum(v * v)

    wh = wh_ref[...]
    bh = bh_ref[...]
    o = out_features
    reg = (
        (ssq(w1_ref[...]) + ssq(b1_ref[...])) * wreg_ref[0] + dreg_ref[0]
        + (ssq(w2_ref[...]) + ssq(b2_ref[...])) * wreg_ref[1] + dreg_ref[1]
        + (ssq(wh[:, :o]) + ssq(bh[:, :o])) * wreg_ref[2] + dreg_ref[2]   # zero block adds 0
        + (ssq(wh[:, o:]) + ssq(bh[:, o:])) * wreg_ref[3] + dreg_ref[3]
    )
    reg_ref[0, 0] = reg


def concrete_model_forward(params, x, key, weight_regularizer, dropout_regularizer):
    B, in_features = x.shape
    nb_features = params["w1"].shape[1]
    out_features = params["wmu"].shape[1]
    L = in_features + 3 * nb_features

    # Per-module scalar glue for the 4 ConcreteDropout modules (plain JAX).
    p = jax.nn.sigmoid(params["p_logit"])                              # (4,)
    logit_p = jnp.log(p + EPS) - jnp.log(1.0 - p + EPS)                # (4,)
    inv_retain = 1.0 / (1.0 - p)                                       # (4,)
    in_dims = jnp.array(
        [in_features, nb_features, nb_features, nb_features], jnp.float32)
    entropy = p * jnp.log(p) + (1.0 - p) * jnp.log(1.0 - p)
    dreg = entropy * dropout_regularizer * in_dims                     # (4,)
    wreg = weight_regularizer * inv_retain                             # (4,)

    # Lane-broadcast per-module constants so the kernel builds all four masks
    # with a single full-vreg log + sigmoid.
    seg = (in_features, nb_features, nb_features, nb_features)

    def lanes(v):
        return jnp.concatenate(
            [jnp.broadcast_to(v[i], (1, s)) for i, s in enumerate(seg)], axis=1)

    lp_lanes = lanes(logit_p)                                          # (1, L)
    invret_lanes = lanes(inv_retain)                                   # (1, L)

    # Uniform noise for all four dropout masks, packed lane-dense.
    u = jax.random.uniform(key, (B, L), jnp.float32)

    # Block-diagonal head weights: one MXU pass produces [mean | log_var].
    z = jnp.zeros((nb_features, out_features), jnp.float32)
    w_heads = jnp.concatenate(
        [jnp.concatenate([params["wmu"], z], axis=1),
         jnp.concatenate([z, params["wlv"]], axis=1)], axis=0)         # (2*nb, 2*out)
    b_heads = jnp.concatenate([params["bmu"], params["blv"]], axis=1)  # (1, 2*out)

    smem = pl.BlockSpec(memory_space=pltpu.MemorySpace.SMEM)
    vmem = pl.BlockSpec(memory_space=pltpu.MemorySpace.VMEM)

    kernel = functools.partial(
        concrete_model_kernel,
        in_features=in_features,
        nb_features=nb_features,
        out_features=out_features,
    )

    heads, reg = pl.pallas_call(
        kernel,
        out_shape=(
            jax.ShapeDtypeStruct((B, 2 * out_features), jnp.float32),
            jax.ShapeDtypeStruct((1, 1), jnp.float32),
        ),
        in_specs=[smem, smem] + [vmem] * 10,
        out_specs=(vmem, smem),
    )(
        wreg, dreg,
        lp_lanes, invret_lanes, u, x,
        params["w1"], params["b1"], params["w2"], params["b2"],
        w_heads, b_heads,
    )

    mean = heads[:, :out_features]
    log_var = heads[:, out_features:]
    return mean, log_var, reg[0, 0]


def _reference_forward(params, x, u, wr, dr):
    """Pure-JAX reference matching the torch module, using the same packed noise."""
    p = jax.nn.sigmoid(params["p_logit"])

    def cdrop(h, u_seg, pi):
        lp = jnp.log(pi + EPS) - jnp.log(1.0 - pi + EPS)
        zlog = lp + jnp.log(u_seg + EPS) - jnp.log(1.0 - u_seg + EPS)
        drop = jax.nn.sigmoid(zlog / TEMP)
        return h * (1.0 - drop) / (1.0 - pi)

    inf = x.shape[1]
    nb = params["w1"].shape[1]
    u1 = u[:, :inf]
    u2 = u[:, inf:inf + nb]
    u3 = u[:, inf + nb:inf + 2 * nb]
    u4 = u[:, inf + 2 * nb:]

    h1 = jnp.tanh(cdrop(x, u1, p[0]) @ params["w1"] + params["b1"])
    h2 = jnp.tanh(cdrop(h1, u2, p[1]) @ params["w2"] + params["b2"])
    mean = cdrop(h2, u3, p[2]) @ params["wmu"] + params["bmu"]
    logvar = cdrop(h2, u4, p[3]) @ params["wlv"] + params["blv"]

    def ssq(a):
        return jnp.sum(a * a)

    sums = jnp.array([
        ssq(params["w1"]) + ssq(params["b1"]),
        ssq(params["w2"]) + ssq(params["b2"]),
        ssq(params["wmu"]) + ssq(params["bmu"]),
        ssq(params["wlv"]) + ssq(params["blv"]),
    ])
    dims = jnp.array([inf, nb, nb, nb], jnp.float32)
    ent = p * jnp.log(p) + (1.0 - p) * jnp.log(1.0 - p)
    regs = wr * sums / (1.0 - p) + ent * dr * dims
    return mean, logvar, jnp.sum(regs)


if __name__ == "__main__":
    B, in_features, nb_features, out_features = 8, 32, 32, 16
    weight_regularizer = 1e-6
    dropout_regularizer = 1e-5

    root = jax.random.PRNGKey(0)
    knoise, kx, k1w, k1b, k2w, k2b, kmw, kmb, klw, klb = jax.random.split(root, 10)

    x = jax.random.normal(kx, (B, in_features), jnp.float32)

    def linear_init(kw, kb, fin, fout):
        bound = 1.0 / np.sqrt(fin)
        w = jax.random.uniform(kw, (fin, fout), jnp.float32, -bound, bound)
        b = jax.random.uniform(kb, (1, fout), jnp.float32, -bound, bound)
        return w, b

    w1, b1 = linear_init(k1w, k1b, in_features, nb_features)
    w2, b2 = linear_init(k2w, k2b, nb_features, nb_features)
    wmu, bmu = linear_init(kmw, kmb, nb_features, out_features)
    wlv, blv = linear_init(klw, klb, nb_features, out_features)

    # p_logit init: uniform(logit(0.1), logit(0.1)) -> constant logit(0.1).
    p_logit = jnp.full((4,), float(np.log(0.1) - np.log(0.9)), jnp.float32)

    params = dict(
        w1=w1, b1=b1, w2=w2, b2=b2,
        wmu=wmu, bmu=bmu, wlv=wlv, blv=blv,
        p_logit=p_logit,
    )

    mean, log_var, reg = concrete_model_forward(
        params, x, knoise, weight_regularizer, dropout_regularizer)
    jax.block_until_ready((mean, log_var, reg))

    assert mean.shape == (B, out_features)
    assert log_var.shape == (B, out_features)
    assert reg.shape == ()

    # Reference check (same packed noise draw as the wrapper).
    L = in_features + 3 * nb_features
    u = jax.random.uniform(knoise, (B, L), jnp.float32)
    ref_mean, ref_logvar, ref_reg = _reference_forward(
        params, x, u, weight_regularizer, dropout_regularizer)
    assert bool(jnp.allclose(mean, ref_mean, rtol=1e-2, atol=1e-2))
    assert bool(jnp.allclose(log_var, ref_logvar, rtol=1e-2, atol=1e-2))
    assert bool(jnp.allclose(reg, ref_reg, rtol=1e-3, atol=1e-6))

    print("KERNEL_OK")
</pallas_src>

<mosaic_0001>
module attributes {stable_mosaic.version = 11 : i64} {
  func.func @concrete_model_kernel(%arg0: memref<4xf32, #tpu.memory_space<smem>>, %arg1: memref<4xf32, #tpu.memory_space<smem>>, %arg2: memref<1x128xf32, #tpu.memory_space<vmem>>, %arg3: memref<1x128xf32, #tpu.memory_space<vmem>>, %arg4: memref<8x128xf32, #tpu.memory_space<vmem>>, %arg5: memref<8x32xf32, #tpu.memory_space<vmem>>, %arg6: memref<32x32xf32, #tpu.memory_space<vmem>>, %arg7: memref<1x32xf32, #tpu.memory_space<vmem>>, %arg8: memref<32x32xf32, #tpu.memory_space<vmem>>, %arg9: memref<1x32xf32, #tpu.memory_space<vmem>>, %arg10: memref<64x32xf32, #tpu.memory_space<vmem>>, %arg11: memref<1x32xf32, #tpu.memory_space<vmem>>, %arg12: memref<8x32xf32, #tpu.memory_space<vmem>>, %arg13: memref<1x1xf32, #tpu.memory_space<smem>>) attributes {dimension_semantics = [], scalar_prefetch = 0 : i64, scratch_operands = 0 : i64, tpu.core_type = #tpu.core_type<tc>} {
    %c0 = arith.constant 0 : index
    %c0_0 = arith.constant 0 : index
    %0 = vector.load %arg4[%c0, %c0_0] : memref<8x128xf32, #tpu.memory_space<vmem>>, vector<8x128xf32>
    %cst = arith.constant 1.000000e-07 : f32
    %1 = vector.broadcast %cst : f32 to vector<8x128xf32>
    %2 = arith.addf %0, %1 : vector<8x128xf32>
    %cst_1 = arith.constant 1.000000e+00 : f32
    %3 = vector.broadcast %cst_1 : f32 to vector<8x128xf32>
    %4 = arith.subf %3, %0 : vector<8x128xf32>
    %cst_2 = arith.constant 1.000000e-07 : f32
    %5 = vector.broadcast %cst_2 : f32 to vector<8x128xf32>
    %6 = arith.addf %4, %5 : vector<8x128xf32>
    %7 = arith.divf %2, %6 : vector<8x128xf32>
    %8 = math.log %7 : vector<8x128xf32>
    %c0_3 = arith.constant 0 : index
    %c0_4 = arith.constant 0 : index
    %9 = vector.load %arg2[%c0_3, %c0_4] : memref<1x128xf32, #tpu.memory_space<vmem>>, vector<1x128xf32>
    %10 = vector.broadcast %9 : vector<1x128xf32> to vector<8x128xf32>
    %11 = arith.addf %10, %8 : vector<8x128xf32>
    %cst_5 = arith.constant 0.000000e+00 : f32
    %12 = vector.broadcast %cst_5 : f32 to vector<8x128xf32>
    %13 = arith.subf %12, %11 : vector<8x128xf32>
    %cst_6 = arith.constant 1.000000e+01 : f32
    %14 = vector.broadcast %cst_6 : f32 to vector<8x128xf32>
    %15 = arith.mulf %13, %14 : vector<8x128xf32>
    %16 = arith.negf %15 : vector<8x128xf32>
    %17 = math.exp %16 : vector<8x128xf32>
    %cst_7 = arith.constant 1.000000e+00 : f32
    %18 = vector.broadcast %cst_7 : f32 to vector<8x128xf32>
    %19 = arith.addf %18, %17 : vector<8x128xf32>
    %20 = arith.divf %18, %19 : vector<8x128xf32>
    %c0_8 = arith.constant 0 : index
    %c0_9 = arith.constant 0 : index
    %21 = vector.load %arg3[%c0_8, %c0_9] : memref<1x128xf32, #tpu.memory_space<vmem>>, vector<1x128xf32>
    %22 = vector.broadcast %21 : vector<1x128xf32> to vector<8x128xf32>
    %23 = arith.mulf %20, %22 : vector<8x128xf32>
    %c0_10 = arith.constant 0 : index
    %c0_11 = arith.constant 0 : index
    %24 = vector.load %arg5[%c0_10, %c0_11] : memref<8x32xf32, #tpu.memory_space<vmem>>, vector<8x32xf32>
    %25 = vector.extract_strided_slice %23 {offsets = [0, 0], sizes = [8, 32], strides = [1, 1]} : vector<8x128xf32> to vector<8x32xf32>
    %26 = arith.mulf %24, %25 : vector<8x32xf32>
    %c0_12 = arith.constant 0 : index
    %c0_13 = arith.constant 0 : index
    %27 = vector.load %arg6[%c0_12, %c0_13] : memref<32x32xf32, #tpu.memory_space<vmem>>, vector<32x32xf32>
    %cst_14 = arith.constant dense<0.000000e+00> : vector<8x32xf32>
    %28 = tpu.matmul %26, %27, %cst_14 {dimension_numbers = #tpu.dot_dimension_numbers<[1], [0], [0], [1], [0, 0, 1, 1], [], []>} : vector<8x32xf32>, vector<32x32xf32>, vector<8x32xf32> -> vector<8x32xf32>
    %c0_15 = arith.constant 0 : index
    %c0_16 = arith.constant 0 : index
    %29 = vector.load %arg7[%c0_15, %c0_16] : memref<1x32xf32, #tpu.memory_space<vmem>>, vector<1x32xf32>
    %30 = vector.broadcast %29 : vector<1x32xf32> to vector<8x32xf32>
    %31 = arith.addf %28, %30 : vector<8x32xf32>
    %32 = math.tanh %31 : vector<8x32xf32>
    %33 = vector.extract_strided_slice %23 {offsets = [0, 32], sizes = [8, 32], strides = [1, 1]} : vector<8x128xf32> to vector<8x32xf32>
    %34 = arith.mulf %32, %33 : vector<8x32xf32>
    %c0_17 = arith.constant 0 : index
    %c0_18 = arith.constant 0 : index
    %35 = vector.load %arg8[%c0_17, %c0_18] : memref<32x32xf32, #tpu.memory_space<vmem>>, vector<32x32xf32>
    %cst_19 = arith.constant dense<0.000000e+00> : vector<8x32xf32>
    %36 = tpu.matmul %34, %35, %cst_19 {dimension_numbers = #tpu.dot_dimension_numbers<[1], [0], [0], [1], [0, 0, 1, 1], [], []>} : vector<8x32xf32>, vector<32x32xf32>, vector<8x32xf32> -> vector<8x32xf32>
    %c0_20 = arith.constant 0 : index
    %c0_21 = arith.constant 0 : index
    %37 = vector.load %arg9[%c0_20, %c0_21] : memref<1x32xf32, #tpu.memory_space<vmem>>, vector<1x32xf32>
    %38 = vector.broadcast %37 : vector<1x32xf32> to vector<8x32xf32>
    %39 = arith.addf %36, %38 : vector<8x32xf32>
    %40 = math.tanh %39 : vector<8x32xf32>
    %41 = vector.extract_strided_slice %23 {offsets = [0, 64], sizes = [8, 32], strides = [1, 1]} : vector<8x128xf32> to vector<8x32xf32>
    %42 = arith.mulf %40, %41 : vector<8x32xf32>
    %43 = vector.extract_strided_slice %23 {offsets = [0, 96], sizes = [8, 32], strides = [1, 1]} : vector<8x128xf32> to vector<8x32xf32>
    %44 = arith.mulf %40, %43 : vector<8x32xf32>
    %45 = tpu.concatenate %42, %44 in 1 : vector<8x32xf32>, vector<8x32xf32> -> vector<8x64xf32>
    %c0_22 = arith.constant 0 : index
    %c0_23 = arith.constant 0 : index
    %46 = vector.load %arg10[%c0_22, %c0_23] : memref<64x32xf32, #tpu.memory_space<vmem>>, vector<64x32xf32>
    %cst_24 = arith.constant dense<0.000000e+00> : vector<8x32xf32>
    %47 = tpu.matmul %45, %46, %cst_24 {dimension_numbers = #tpu.dot_dimension_numbers<[1], [0], [0], [1], [0, 0, 1, 1], [], []>} : vector<8x64xf32>, vector<64x32xf32>, vector<8x32xf32> -> vector<8x32xf32>
    %c0_25 = arith.constant 0 : index
    %c0_26 = arith.constant 0 : index
    %48 = vector.load %arg11[%c0_25, %c0_26] : memref<1x32xf32, #tpu.memory_space<vmem>>, vector<1x32xf32>
    %49 = vector.broadcast %48 : vector<1x32xf32> to vector<8x32xf32>
    %50 = arith.addf %47, %49 : vector<8x32xf32>
    %c0_27 = arith.constant 0 : index
    %c0_28 = arith.constant 0 : index
    %51 = vector.load %arg12[%c0_27, %c0_28] : memref<8x32xf32, #tpu.memory_space<vmem>>, vector<8x32xf32>
    tpu.vector_store %arg12[%c0_27, %c0_28], %50 {strides = array<i32>} : memref<8x32xf32, #tpu.memory_space<vmem>>, vector<8x32xf32>,
    %c0_29 = arith.constant 0 : index
    %c0_30 = arith.constant 0 : index
    %52 = vector.load %arg10[%c0_29, %c0_30] : memref<64x32xf32, #tpu.memory_space<vmem>>, vector<64x32xf32>
    %c0_31 = arith.constant 0 : index
    %c0_32 = arith.constant 0 : index
    %53 = vector.load %arg11[%c0_31, %c0_32] : memref<1x32xf32, #tpu.memory_space<vmem>>, vector<1x32xf32>
    %c0_33 = arith.constant 0 : index
    %c0_34 = arith.constant 0 : index
    %54 = vector.load %arg6[%c0_33, %c0_34] : memref<32x32xf32, #tpu.memory_space<vmem>>, vector<32x32xf32>
    %55 = arith.mulf %54, %54 : vector<32x32xf32>
    %56 = vector.shape_cast %55 : vector<32x32xf32> to vector<1x32x32xf32>
    %cst_35 = arith.constant dense<0.000000e+00> : vector<1xf32>
    %57 = vector.multi_reduction <add>, %56, %cst_35 [1, 2] : vector<1x32x32xf32> to vector<1xf32>
    %58 = vector.shape_cast %57 : vector<1xf32> to vector<1x1x1xf32>
    %59 = vector.extract %58[0, 0, 0] : f32 from vector<1x1x1xf32>
    %c0_36 = arith.constant 0 : index
    %c0_37 = arith.constant 0 : index
    %60 = vector.load %arg7[%c0_36, %c0_37] : memref<1x32xf32, #tpu.memory_space<vmem>>, vector<1x32xf32>
    %61 = arith.mulf %60, %60 : vector<1x32xf32>
    %62 = vector.shape_cast %61 : vector<1x32xf32> to vector<1x1x32xf32>
    %cst_38 = arith.constant dense<0.000000e+00> : vector<1xf32>
    %63 = vector.multi_reduction <add>, %62, %cst_38 [1, 2] : vector<1x1x32xf32> to vector<1xf32>
    %64 = vector.shape_cast %63 : vector<1xf32> to vector<1x1x1xf32>
    %65 = vector.extract %64[0, 0, 0] : f32 from vector<1x1x1xf32>
    %66 = arith.addf %59, %65 : f32
    %c0_39 = arith.constant 0 : index
    %67 = memref.load %arg0[%c0_39] : memref<4xf32, #tpu.memory_space<smem>>
    %68 = arith.mulf %66, %67 : f32
    %c0_40 = arith.constant 0 : index
    %69 = memref.load %arg1[%c0_40] : memref<4xf32, #tpu.memory_space<smem>>
    %70 = arith.addf %68, %69 : f32
    %c0_41 = arith.constant 0 : index
    %c0_42 = arith.constant 0 : index
    %71 = vector.load %arg8[%c0_41, %c0_42] : memref<32x32xf32, #tpu.memory_space<vmem>>, vector<32x32xf32>
    %72 = arith.mulf %71, %71 : vector<32x32xf32>
    %73 = vector.shape_cast %72 : vector<32x32xf32> to vector<1x32x32xf32>
    %cst_43 = arith.constant dense<0.000000e+00> : vector<1xf32>
    %74 = vector.multi_reduction <add>, %73, %cst_43 [1, 2] : vector<1x32x32xf32> to vector<1xf32>
    %75 = vector.shape_cast %74 : vector<1xf32> to vector<1x1x1xf32>
    %76 = vector.extract %75[0, 0, 0] : f32 from vector<1x1x1xf32>
    %c0_44 = arith.constant 0 : index
    %c0_45 = arith.constant 0 : index
    %77 = vector.load %arg9[%c0_44, %c0_45] : memref<1x32xf32, #tpu.memory_space<vmem>>, vector<1x32xf32>
    %78 = arith.mulf %77, %77 : vector<1x32xf32>
    %79 = vector.shape_cast %78 : vector<1x32xf32> to vector<1x1x32xf32>
    %cst_46 = arith.constant dense<0.000000e+00> : vector<1xf32>
    %80 = vector.multi_reduction <add>, %79, %cst_46 [1, 2] : vector<1x1x32xf32> to vector<1xf32>
    %81 = vector.shape_cast %80 : vector<1xf32> to vector<1x1x1xf32>
    %82 = vector.extract %81[0, 0, 0] : f32 from vector<1x1x1xf32>
    %83 = arith.addf %76, %82 : f32
    %c1 = arith.constant 1 : index
    %84 = memref.load %arg0[%c1] : memref<4xf32, #tpu.memory_space<smem>>
    %85 = arith.mulf %83, %84 : f32
    %86 = arith.addf %70, %85 : f32
    %c1_47 = arith.constant 1 : index
    %87 = memref.load %arg1[%c1_47] : memref<4xf32, #tpu.memory_space<smem>>
    %88 = arith.addf %86, %87 : f32
    %89 = vector.extract_strided_slice %52 {offsets = [0, 0], sizes = [64, 16], strides = [1, 1]} : vector<64x32xf32> to vector<64x16xf32>
    %90 = arith.mulf %89, %89 : vector<64x16xf32>
    %91 = vector.shape_cast %90 : vector<64x16xf32> to vector<1x64x16xf32>
    %cst_48 = arith.constant dense<0.000000e+00> : vector<1xf32>
    %92 = vector.multi_reduction <add>, %91, %cst_48 [1, 2] : vector<1x64x16xf32> to vector<1xf32>
    %93 = vector.shape_cast %92 : vector<1xf32> to vector<1x1x1xf32>
    %94 = vector.extract %93[0, 0, 0] : f32 from vector<1x1x1xf32>
    %95 = vector.extract_strided_slice %53 {offsets = [0, 0], sizes = [1, 16], strides = [1, 1]} : vector<1x32xf32> to vector<1x16xf32>
    %96 = arith.mulf %95, %95 : vector<1x16xf32>
    %97 = vector.shape_cast %96 : vector<1x16xf32> to vector<1x1x16xf32>
    %cst_49 = arith.constant dense<0.000000e+00> : vector<1xf32>
    %98 = vector.multi_reduction <add>, %97, %cst_49 [1, 2] : vector<1x1x16xf32> to vector<1xf32>
    %99 = vector.shape_cast %98 : vector<1xf32> to vector<1x1x1xf32>
    %100 = vector.extract %99[0, 0, 0] : f32 from vector<1x1x1xf32>
    %101 = arith.addf %94, %100 : f32
    %c2 = arith.constant 2 : index
    %102 = memref.load %arg0[%c2] : memref<4xf32, #tpu.memory_space<smem>>
    %103 = arith.mulf %101, %102 : f32
    %104 = arith.addf %88, %103 : f32
    %c2_50 = arith.constant 2 : index
    %105 = memref.load %arg1[%c2_50] : memref<4xf32, #tpu.memory_space<smem>>
    %106 = arith.addf %104, %105 : f32
    %107 = vector.extract_strided_slice %52 {offsets = [0, 16], sizes = [64, 16], strides = [1, 1]} : vector<64x32xf32> to vector<64x16xf32>
    %108 = arith.mulf %107, %107 : vector<64x16xf32>
    %109 = vector.shape_cast %108 : vector<64x16xf32> to vector<1x64x16xf32>
    %cst_51 = arith.constant dense<0.000000e+00> : vector<1xf32>
    %110 = vector.multi_reduction <add>, %109, %cst_51 [1, 2] : vector<1x64x16xf32> to vector<1xf32>
    %111 = vector.shape_cast %110 : vector<1xf32> to vector<1x1x1xf32>
    %112 = vector.extract %111[0, 0, 0] : f32 from vector<1x1x1xf32>
    %113 = vector.extract_strided_slice %53 {offsets = [0, 16], sizes = [1, 16], strides = [1, 1]} : vector<1x32xf32> to vector<1x16xf32>
    %114 = arith.mulf %113, %113 : vector<1x16xf32>
    %115 = vector.shape_cast %114 : vector<1x16xf32> to vector<1x1x16xf32>
    %cst_52 = arith.constant dense<0.000000e+00> : vector<1xf32>
    %116 = vector.multi_reduction <add>, %115, %cst_52 [1, 2] : vector<1x1x16xf32> to vector<1xf32>
    %117 = vector.shape_cast %116 : vector<1xf32> to vector<1x1x1xf32>
    %118 = vector.extract %117[0, 0, 0] : f32 from vector<1x1x1xf32>
    %119 = arith.addf %112, %118 : f32
    %c3 = arith.constant 3 : index
    %120 = memref.load %arg0[%c3] : memref<4xf32, #tpu.memory_space<smem>>
    %121 = arith.mulf %119, %120 : f32
    %122 = arith.addf %106, %121 : f32
    %c3_53 = arith.constant 3 : index
    %123 = memref.load %arg1[%c3_53] : memref<4xf32, #tpu.memory_space<smem>>
    %124 = arith.addf %122, %123 : f32
    %c0_54 = arith.constant 0 : index
    %c0_55 = arith.constant 0 : index
    %125 = memref.load %arg13[%c0_54, %c0_55] : memref<1x1xf32, #tpu.memory_space<smem>>
    memref.store %124, %arg13[%c0_54, %c0_55] : memref<1x1xf32, #tpu.memory_space<smem>>
    return
  }
}

</mosaic_0001>

<llo_original>
// kernel: tpu_custom_call.1
$region0: #{tpu_custom_call.1}
  #allocation0 [shape = 'u32[]', space=smem, size = 0x4, offset = 0x4, fixed_abs, tag = 'smem constant byte address 0x4 - core index']
  #allocation1 [shape = 'u32[144,128]{1,0:T(1,128)}', space=vmem, size = 0x12000, scoped, tag = 'internal scratch']
  %s0 = inlined_call_operand.vmem [shape: f32[4], index: 0, kind: input, shape index: {}]
  %s1 = inlined_call_operand.vmem [shape: f32[4], index: 1, kind: input, shape index: {}]
  %s2 = inlined_call_operand.vmem [shape: f32[1,128], index: 2, kind: input, shape index: {}]
  %s3 = inlined_call_operand.vmem [shape: f32[1,128], index: 3, kind: input, shape index: {}]
  %s4 = inlined_call_operand.vmem [shape: f32[8,128], index: 4, kind: input, shape index: {}]
  %s5 = inlined_call_operand.vmem [shape: f32[8,32], index: 5, kind: input, shape index: {}]
  %s6 = inlined_call_operand.vmem [shape: f32[32,32], index: 6, kind: input, shape index: {}]
  %s7 = inlined_call_operand.vmem [shape: f32[1,32], index: 7, kind: input, shape index: {}]
  %s8 = inlined_call_operand.vmem [shape: f32[32,32], index: 8, kind: input, shape index: {}]
  %s9 = inlined_call_operand.vmem [shape: f32[1,32], index: 9, kind: input, shape index: {}]
  %s10 = inlined_call_operand.vmem [shape: f32[64,32], index: 10, kind: input, shape index: {}]
  %s11 = inlined_call_operand.vmem [shape: f32[1,32], index: 11, kind: input, shape index: {}]
  %s12 = inlined_call_operand.hbm [shape: f32[8,32], index: 12, kind: output, shape index: {0}]
  %s13 = inlined_call_operand.hbm [shape: f32[1,1], index: 13, kind: output, shape index: {1}]
  %14 = xla_tuple %s12, %s13
  %s15 = sld [smem:[#allocation0]]
  $region74: #{tpu_custom_call.1} parent=0
    _
  %s17 = ssub.s32 1, %s15
  %s18 = scalar_select 0, %s17, %s15
  $region1: #{tpu_custom_call.1} parent=0
    #allocation2 [shape = 'u8[512]{0}', space=smem, size = 0x200, scoped, tag = 'input window, operand 0, single buffered']
    #allocation3 [shape = 's32[1]{0}', space=sflag, size = 0x4, scoped, tag = 'scoped memory for tpu_custom_call.1']
    #allocation4 [shape = 's32[1]{0}', space=sflag, size = 0x4, scoped, tag = 'scoped memory for tpu_custom_call.1']
    #allocation5 [shape = 's32[1]{0}', space=sflag, size = 0x4, scoped, tag = 'scoped memory for tpu_custom_call.1']
    #allocation6 [shape = 'u8[512]{0}', space=smem, size = 0x200, scoped, tag = 'input window, operand 1, single buffered']
    #allocation7 [shape = 's32[1]{0}', space=sflag, size = 0x4, scoped, tag = 'scoped memory for tpu_custom_call.1']
    #allocation8 [shape = 'u8[4096]{0}', space=vmem, size = 0x1000, scoped, tag = 'output window, operand 0, single buffered']
    #allocation9 [shape = 'u8[512]{0}', space=smem, size = 0x200, scoped, tag = 'output window, operand 1, single buffered']
    %19 = vsyncpa [#allocation5], 0
    %20 = vsyncpa [#allocation7], 0
    %21 = vsyncpa [#allocation3], 0
    %22 = vsyncpa [#allocation4], 0
    // Predicated region
    $region2: #{tpu_custom_call.1} parent=1 // pred_check
      _
    $region3: #{tpu_custom_call.1} parent=1 // pred_check_branch
      %24 = sbr.rel (0) target = $region5
    $region4: #{tpu_custom_call.1} parent=1 // pred_region
      %s26 = ssub.s32 16, 16
      %27 = vsyncadd [#allocation5], %s26
      %s29 = sshll.u32 %s0, 4
      %s30 = int_to_ptr.vmem [resolvable:$true] %s29
      %32 = dma.vmem_to_smem %s30, 16, [#allocation2], [#allocation5]
    $region5: #{tpu_custom_call.1} parent=1 // pred_fallthru
      _
    // Predicated region
    $region6: #{tpu_custom_call.1} parent=1 // pred_check
      _
    $region7: #{tpu_custom_call.1} parent=1 // pred_check_branch
      %34 = sbr.rel (0) target = $region9
    $region8: #{tpu_custom_call.1} parent=1 // pred_region
      %s36 = ssub.s32 16, 16
      %37 = vsyncadd [#allocation7], %s36
      %s39 = sshll.u32 %s1, 4
      %s40 = int_to_ptr.vmem [resolvable:$true] %s39
      %42 = dma.vmem_to_smem %s40, 16, [#allocation6], [#allocation7]
    $region9: #{tpu_custom_call.1} parent=1 // pred_fallthru
      _
    // Predicated region
    $region10: #{tpu_custom_call.1} parent=1 // pred_check
      _
    $region11: #{tpu_custom_call.1} parent=1 // pred_check_branch
      %44 = sbr.rel (0) target = $region13
    $region12: #{tpu_custom_call.1} parent=1 // pred_region
      _
    $region13: #{tpu_custom_call.1} parent=1 // pred_fallthru
      _
    // Predicated region
    $region14: #{tpu_custom_call.1} parent=1 // pred_check
      _
    $region15: #{tpu_custom_call.1} parent=1 // pred_check_branch
      %46 = sbr.rel (0) target = $region17
    $region16: #{tpu_custom_call.1} parent=1 // pred_region
      _
    $region17: #{tpu_custom_call.1} parent=1 // pred_fallthru
      _
    // Predicated region
    $region18: #{tpu_custom_call.1} parent=1 // pred_check
      _
    $region19: #{tpu_custom_call.1} parent=1 // pred_check_branch
      %48 = sbr.rel (0) target = $region21
    $region20: #{tpu_custom_call.1} parent=1 // pred_region
      _
    $region21: #{tpu_custom_call.1} parent=1 // pred_fallthru
      _
    // Predicated region
    $region22: #{tpu_custom_call.1} parent=1 // pred_check
      _
    $region23: #{tpu_custom_call.1} parent=1 // pred_check_branch
      %50 = sbr.rel (0) target = $region25
    $region24: #{tpu_custom_call.1} parent=1 // pred_region
      _
    $region25: #{tpu_custom_call.1} parent=1 // pred_fallthru
      _
    // Predicated region
    $region26: #{tpu_custom_call.1} parent=1 // pred_check
      _
    $region27: #{tpu_custom_call.1} parent=1 // pred_check_branch
      %52 = sbr.rel (0) target = $region29
    $region28: #{tpu_custom_call.1} parent=1 // pred_region
      _
    $region29: #{tpu_custom_call.1} parent=1 // pred_fallthru
      _
    // Predicated region
    $region30: #{tpu_custom_call.1} parent=1 // pred_check
      _
    $region31: #{tpu_custom_call.1} parent=1 // pred_check_branch
      %54 = sbr.rel (0) target = $region33
    $region32: #{tpu_custom_call.1} parent=1 // pred_region
      _
    $region33: #{tpu_custom_call.1} parent=1 // pred_fallthru
      _
    // Predicated region
    $region34: #{tpu_custom_call.1} parent=1 // pred_check
      _
    $region35: #{tpu_custom_call.1} parent=1 // pred_check_branch
      %56 = sbr.rel (0) target = $region37
    $region36: #{tpu_custom_call.1} parent=1 // pred_region
      _
    $region37: #{tpu_custom_call.1} parent=1 // pred_fallthru
      _
    // Predicated region
    $region38: #{tpu_custom_call.1} parent=1 // pred_check
      _
    $region39: #{tpu_custom_call.1} parent=1 // pred_check_branch
      %58 = sbr.rel (0) target = $region41
    $region40: #{tpu_custom_call.1} parent=1 // pred_region
      _
    $region41: #{tpu_custom_call.1} parent=1 // pred_fallthru
      _
    // Predicated region
    $region42: #{tpu_custom_call.1} parent=1 // pred_check
      _
    $region43: #{tpu_custom_call.1} parent=1 // pred_check_branch
      %60 = sbr.rel (0) target = $region45
    $region44: #{tpu_custom_call.1} parent=1 // pred_region
      _
    $region45: #{tpu_custom_call.1} parent=1 // pred_fallthru
      _
    // Predicated region
    $region46: #{tpu_custom_call.1} parent=1 // pred_check
      _
    $region47: #{tpu_custom_call.1} parent=1 // pred_check_branch
      %62 = sbr.rel (0) target = $region49
    $region48: #{tpu_custom_call.1} parent=1 // pred_region
      _
    $region49: #{tpu_custom_call.1} parent=1 // pred_fallthru
      _
    // Predicated region
    $region50: #{tpu_custom_call.1} parent=1 // pred_check
      _
    $region51: #{tpu_custom_call.1} parent=1 // pred_check_branch
      %64 = sbr.rel (0) target = $region53
    $region52: #{tpu_custom_call.1} parent=1 // pred_region
      %65 = dma.done [#allocation5], 16
    $region53: #{tpu_custom_call.1} parent=1 // pred_fallthru
      _
    // Predicated region
    $region54: #{tpu_custom_call.1} parent=1 // pred_check
      _
    $region55: #{tpu_custom_call.1} parent=1 // pred_check_branch
      %67 = sbr.rel (0) target = $region57
    $region56: #{tpu_custom_call.1} parent=1 // pred_region
      %68 = dma.done [#allocation7], 16
    $region57: #{tpu_custom_call.1} parent=1 // pred_fallthru
      _
    %69 = sfence
    %v70 = vld [vmem:[%s4] sm:$0xff]
    %v71 = vadd.f32 %v70, 1e-07
    %v72 = vsub.f32 1.0, %v70
    %v73 = vadd.f32 %v72, 1e-07
    %v74 = vrcp.pop %v73
    %v75 = vmul.f32 %v71, %v74
    %v76 = vlog2.pop %v75
    %v77 = vmul.f32 %v76, 0.6931472
    %v78 = vld [vmem:[%s2] sm:$0x1]
    %v80 = vlaneseq
    %v81 = vshrl.u32 %v80, 7
    %v82 = vsub.s32 0, %v81
    %v83 = vrot.slane %v78, %v82
    %v85 = vadd.f32 %v83, %v77
    %v86 = vsub.f32 0.0, %v85
    %v87 = vmul.f32 %v86, 10.0
    %v88 = vxor.u32 %v87, 2147483648
    %v89 = vmul.f32 %v88, 1.442695
    %v90 = vpow.pop %v89
    %v91 = vadd.f32 %v90, 1.0
    %v92 = vrcp.pop %v91
    %v93 = vmul.f32 1.0, %v92
    %v94 = vld [vmem:[%s3] sm:$0x1]
    %v96 = vlaneseq
    %v97 = vshrl.u32 %v96, 7
    %v98 = vsub.s32 0, %v97
    %v99 = vrot.slane %v94, %v98
    %v101 = vmul.f32 %v93, %v99
    %v102 = vld [vmem:[%s5] sm:$0xff]
    %v103 = vmul.f32 %v102, %v101
    %v104 = vld [vmem:[%s6] sm:$0xff]
    %v105 = vld [vmem:[%s6 + $0x8] sm:$0xff]
    %v106 = vld [vmem:[%s6 + $0x10] sm:$0xff]
    %v107 = vld [vmem:[%s6 + $0x18] sm:$0xff]
    %v108 = vld [vmem:[%s7] sm:$0x1]
    %v110 = vlaneseq
    %v111 = vshrl.u32 %v110, 7
    %v112 = vsub.s32 0, %v111
    %v113 = vrot.slane %v108, %v112
    %vm115 = vcmask 261120
    %v117 = vsel %vm115, %v103, 0
    %119 = vmatprep.subr.mxu0 0.0
    %120 = vmatpush1.msra.mxu0 %v104
    %121 = vmatprep.subr.mxu0 0.0
    %122 = vmatpush1.msra.mxu0 %v105
    %123 = vmatprep.subr.mxu0 0.0
    %124 = vmatpush1.msra.mxu0 %v106
    %125 = vmatprep.subr.mxu0 0.0
    %126 = vmatpush1.msra.mxu0 %v107
    %127 = vmatprep.subr.mxu0 0.0
    %128 = vmatpush1.msra.mxu0 0.0
    %129 = vmatprep.subr.mxu0 0.0
    %130 = vmatpush1.msra.mxu0 0.0
    %131 = vmatprep.subr.mxu0 0.0
    %132 = vmatpush1.msra.mxu0 0.0
    %133 = vmatprep.subr.mxu0 0.0
    %134 = vmatpush1.msra.mxu0 0.0
    %135 = vmatprep.subr.mxu0 0.0
    %136 = vmatpush1.msra.mxu0 0.0
    %137 = vmatprep.subr.mxu0 0.0
    %138 = vmatpush1.msra.mxu0 0.0
    %139 = vmatprep.subr.mxu0 0.0
    %140 = vmatpush1.msra.mxu0 0.0
    %141 = vmatprep.subr.mxu0 0.0
    %142 = vmatpush1.msra.mxu0 0.0
    %143 = vmatprep.subr.mxu0 0.0
    %144 = vmatpush1.msra.mxu0 0.0
    %145 = vmatprep.subr.mxu0 0.0
    %146 = vmatpush1.msra.mxu0 0.0
    %147 = vmatprep.subr.mxu0 0.0
    %148 = vmatpush1.msra.mxu0 0.0
    %149 = vmatprep.subr.mxu0 0.0
    %150 = vmatpush1.msra.mxu0 0.0
    %151 = vmatprep.subr.mxu0 0.0
    %152 = vmatpush1.msra.mxu0 0.0
    %153 = vmatprep.subr.mxu0 0.0
    %154 = vmatpush1.msra.mxu0 0.0
    %155 = vmatprep.subr.mxu0 0.0
    %156 = vmatpush1.msra.mxu0 0.0
    %157 = vmatprep.subr.mxu0 0.0
    %158 = vmatpush1.msra.mxu0 0.0
    %159 = vmatprep.subr.mxu0 0.0
    %160 = vmatpush1.msra.mxu0 0.0
    %161 = vmatprep.subr.mxu0 0.0
    %162 = vmatpush1.msra.mxu0 0.0
    %163 = vmatprep.subr.mxu0 0.0
    %164 = vmatpush1.msra.mxu0 0.0
    %165 = vmatprep.subr.mxu0 0.0
    %166 = vmatpush1.msra.mxu0 0.0
    %167 = vmatprep.subr.mxu0 0.0
    %168 = vmatpush1.msra.mxu0 0.0
    %169 = vmatprep.subr.mxu0 0.0
    %170 = vmatpush1.msra.mxu0 0.0
    %171 = vmatprep.subr.mxu0 0.0
    %172 = vmatpush1.msra.mxu0 0.0
    %173 = vmatprep.subr.mxu0 0.0
    %174 = vmatpush1.msra.mxu0 0.0
    %175 = vmatprep.subr.mxu0 0.0
    %176 = vmatpush1.msra.mxu0 0.0
    %177 = vmatprep.subr.mxu0 0.0
    %178 = vmatpush1.msra.mxu0 0.0
    %179 = vmatprep.subr.mxu0 0.0
    %180 = vmatpush1.msra.mxu0 0.0
    %181 = vmatprep.subr.mxu0 0.0
    %182 = vmatpush1.msra.mxu0 0.0
    %183 = vmatprep.mubr.f32.mxu0 0.0
    %184 = vmatmul.mubr.f32.gmra.mrb[0].mxu0 %v117
    %v185 = vpop.f32.mrb[0].mxu0
    %v186 = vadd.f32 %v113, %v185
    %v187 = vpop.f32.mrb[0].mxu0
    %188 = vdwg.mxu0
    %v189 = vtanh.pop %v186
    %191 = vrot.lane.b32.xlu0 %v101, 96
    %v192 = vpop.permute.xlu0 %191
    %v194 = vmul.f32 %v189, %v192
    %v195 = vld [vmem:[%s8] sm:$0xff]
    %v196 = vld [vmem:[%s8 + $0x8] sm:$0xff]
    %v197 = vld [vmem:[%s8 + $0x10] sm:$0xff]
    %v198 = vld [vmem:[%s8 + $0x18] sm:$0xff]
    %v199 = vld [vmem:[%s9] sm:$0x1]
    %v201 = vlaneseq
    %v202 = vshrl.u32 %v201, 7
    %v203 = vsub.s32 0, %v202
    %v204 = vrot.slane %v199, %v203
    %v207 = vsel %vm115, %v194, 0
    %209 = vmatprep.subr.mxu0 0.0
    %210 = vmatpush1.msra.mxu0 %v195
    %211 = vmatprep.subr.mxu0 0.0
    %212 = vmatpush1.msra.mxu0 %v196
    %213 = vmatprep.subr.mxu0 0.0
    %214 = vmatpush1.msra.mxu0 %v197
    %215 = vmatprep.subr.mxu0 0.0
    %216 = vmatpush1.msra.mxu0 %v198
    %217 = vmatprep.subr.mxu0 0.0
    %218 = vmatpush1.msra.mxu0 0.0
    %219 = vmatprep.subr.mxu0 0.0
    %220 = vmatpush1.msra.mxu0 0.0
    %221 = vmatprep.subr.mxu0 0.0
    %222 = vmatpush1.msra.mxu0 0.0
    %223 = vmatprep.subr.mxu0 0.0
    %224 = vmatpush1.msra.mxu0 0.0
    %225 = vmatprep.subr.mxu0 0.0
    %226 = vmatpush1.msra.mxu0 0.0
    %227 = vmatprep.subr.mxu0 0.0
    %228 = vmatpush1.msra.mxu0 0.0
    %229 = vmatprep.subr.mxu0 0.0
    %230 = vmatpush1.msra.mxu0 0.0
    %231 = vmatprep.subr.mxu0 0.0
    %232 = vmatpush1.msra.mxu0 0.0
    %233 = vmatprep.subr.mxu0 0.0
    %234 = vmatpush1.msra.mxu0 0.0
    %235 = vmatprep.subr.mxu0 0.0
    %236 = vmatpush1.msra.mxu0 0.0
    %237 = vmatprep.subr.mxu0 0.0
    %238 = vmatpush1.msra.mxu0 0.0
    %239 = vmatprep.subr.mxu0 0.0
    %240 = vmatpush1.msra.mxu0 0.0
    %241 = vmatprep.subr.mxu0 0.0
    %242 = vmatpush1.msra.mxu0 0.0
    %243 = vmatprep.subr.mxu0 0.0
    %244 = vmatpush1.msra.mxu0 0.0
    %245 = vmatprep.subr.mxu0 0.0
    %246 = vmatpush1.msra.mxu0 0.0
    %247 = vmatprep.subr.mxu0 0.0
    %248 = vmatpush1.msra.mxu0 0.0
    %249 = vmatprep.subr.mxu0 0.0
    %250 = vmatpush1.msra.mxu0 0.0
    %251 = vmatprep.subr.mxu0 0.0
    %252 = vmatpush1.msra.mxu0 0.0
    %253 = vmatprep.subr.mxu0 0.0
    %254 = vmatpush1.msra.mxu0 0.0
    %255 = vmatprep.subr.mxu0 0.0
    %256 = vmatpush1.msra.mxu0 0.0
    %257 = vmatprep.subr.mxu0 0.0
    %258 = vmatpush1.msra.mxu0 0.0
    %259 = vmatprep.subr.mxu0 0.0
    %260 = vmatpush1.msra.mxu0 0.0
    %261 = vmatprep.subr.mxu0 0.0
    %262 = vmatpush1.msra.mxu0 0.0
    %263 = vmatprep.subr.mxu0 0.0
    %264 = vmatpush1.msra.mxu0 0.0
    %265 = vmatprep.subr.mxu0 0.0
    %266 = vmatpush1.msra.mxu0 0.0
    %267 = vmatprep.subr.mxu0 0.0
    %268 = vmatpush1.msra.mxu0 0.0
    %269 = vmatprep.subr.mxu0 0.0
    %270 = vmatpush1.msra.mxu0 0.0
    %271 = vmatprep.subr.mxu0 0.0
    %272 = vmatpush1.msra.mxu0 0.0
    %273 = vmatprep.mubr.f32.mxu0 0.0
    %274 = vmatmul.mubr.f32.gmra.mrb[0].mxu0 %v207
    %v275 = vpop.f32.mrb[0].mxu0
    %v276 = vadd.f32 %v204, %v275
    %v277 = vpop.f32.mrb[0].mxu0
    %278 = vdwg.mxu0
    %v279 = vtanh.pop %v276
    %280 = vrot.lane.b32.xlu0 %v101, 64
    %v281 = vpop.permute.xlu0 %280
    %v283 = vmul.f32 %v279, %v281
    %284 = vrot.lane.b32.xlu0 %v101, 32
    %v285 = vpop.permute.xlu0 %284
    %v287 = vmul.f32 %v279, %v285
    %289 = vrot.lane.b32.xlu0 %v287, 32
    %v290 = vpop.permute.xlu0 %289
    %v292 = vsel %vm115, %v283, %v290
    %v293 = vld [vmem:[%s10] sm:$0xff]
    %v294 = vld [vmem:[%s10 + $0x8] sm:$0xff]
    %v295 = vld [vmem:[%s10 + $0x10] sm:$0xff]
    %v296 = vld [vmem:[%s10 + $0x18] sm:$0xff]
    %v297 = vld [vmem:[%s10 + $0x20] sm:$0xff]
    %v298 = vld [vmem:[%s10 + $0x28] sm:$0xff]
    %v299 = vld [vmem:[%s10 + $0x30] sm:$0xff]
    %v300 = vld [vmem:[%s10 + $0x38] sm:$0xff]
    %v301 = vld [vmem:[%s11] sm:$0x1]
    %v303 = vlaneseq
    %v304 = vshrl.u32 %v303, 7
    %v305 = vsub.s32 0, %v304
    %v306 = vrot.slane %v301, %v305
    %vm308 = vcmask 523264
    %v310 = vsel %vm308, %v292, 0
    %312 = vmatprep.subr.mxu0 0.0
    %313 = vmatpush1.msra.mxu0 %v293
    %314 = vmatprep.subr.mxu0 0.0
    %315 = vmatpush1.msra.mxu0 %v294
    %316 = vmatprep.subr.mxu0 0.0
    %317 = vmatpush1.msra.mxu0 %v295
    %318 = vmatprep.subr.mxu0 0.0
    %319 = vmatpush1.msra.mxu0 %v296
    %320 = vmatprep.subr.mxu0 0.0
    %321 = vmatpush1.msra.mxu0 %v297
    %322 = vmatprep.subr.mxu0 0.0
    %323 = vmatpush1.msra.mxu0 %v298
    %324 = vmatprep.subr.mxu0 0.0
    %325 = vmatpush1.msra.mxu0 %v299
    %326 = vmatprep.subr.mxu0 0.0
    %327 = vmatpush1.msra.mxu0 %v300
    %328 = vmatprep.subr.mxu0 0.0
    %329 = vmatpush1.msra.mxu0 0.0
    %330 = vmatprep.subr.mxu0 0.0
    %331 = vmatpush1.msra.mxu0 0.0
    %332 = vmatprep.subr.mxu0 0.0
    %333 = vmatpush1.msra.mxu0 0.0
    %334 = vmatprep.subr.mxu0 0.0
    %335 = vmatpush1.msra.mxu0 0.0
    %336 = vmatprep.subr.mxu0 0.0
    %337 = vmatpush1.msra.mxu0 0.0
    %338 = vmatprep.subr.mxu0 0.0
    %339 = vmatpush1.msra.mxu0 0.0
    %340 = vmatprep.subr.mxu0 0.0
    %341 = vmatpush1.msra.mxu0 0.0
    %342 = vmatprep.subr.mxu0 0.0
    %343 = vmatpush1.msra.mxu0 0.0
    %344 = vmatprep.subr.mxu0 0.0
    %345 = vmatpush1.msra.mxu0 0.0
    %346 = vmatprep.subr.mxu0 0.0
    %347 = vmatpush1.msra.mxu0 0.0
    %348 = vmatprep.subr.mxu0 0.0
    %349 = vmatpush1.msra.mxu0 0.0
    %350 = vmatprep.subr.mxu0 0.0
    %351 = vmatpush1.msra.mxu0 0.0
    %352 = vmatprep.subr.mxu0 0.0
    %353 = vmatpush1.msra.mxu0 0.0
    %354 = vmatprep.subr.mxu0 0.0
    %355 = vmatpush1.msra.mxu0 0.0
    %356 = vmatprep.subr.mxu0 0.0
    %357 = vmatpush1.msra.mxu0 0.0
    %358 = vmatprep.subr.mxu0 0.0
    %359 = vmatpush1.msra.mxu0 0.0
    %360 = vmatprep.subr.mxu0 0.0
    %361 = vmatpush1.msra.mxu0 0.0
    %362 = vmatprep.subr.mxu0 0.0
    %363 = vmatpush1.msra.mxu0 0.0
    %364 = vmatprep.subr.mxu0 0.0
    %365 = vmatpush1.msra.mxu0 0.0
    %366 = vmatprep.subr.mxu0 0.0
    %367 = vmatpush1.msra.mxu0 0.0
    %368 = vmatprep.subr.mxu0 0.0
    %369 = vmatpush1.msra.mxu0 0.0
    %370 = vmatprep.subr.mxu0 0.0
    %371 = vmatpush1.msra.mxu0 0.0
    %372 = vmatprep.subr.mxu0 0.0
    %373 = vmatpush1.msra.mxu0 0.0
    %374 = vmatprep.subr.mxu0 0.0
    %375 = vmatpush1.msra.mxu0 0.0
    %376 = vmatprep.mubr.f32.mxu0 0.0
    %377 = vmatmul.mubr.f32.gmra.mrb[0].mxu0 %v310
    %v378 = vpop.f32.mrb[0].mxu0
    %v379 = vadd.f32 %v306, %v378
    %v380 = vpop.f32.mrb[0].mxu0
    %381 = vdwg.mxu0
    %382 = vst.msk [vmem:[#allocation8] sm:$0xff] %vm115, %v379
    %v383 = vld [vmem:[%s10] sm:$0xff]
    %v384 = vld [vmem:[%s10 + $0x8] sm:$0xff]
    %v385 = vld [vmem:[%s10 + $0x10] sm:$0xff]
    %v386 = vld [vmem:[%s10 + $0x18] sm:$0xff]
    %v387 = vld [vmem:[%s10 + $0x20] sm:$0xff]
    %v388 = vld [vmem:[%s10 + $0x28] sm:$0xff]
    %v389 = vld [vmem:[%s10 + $0x30] sm:$0xff]
    %v390 = vld [vmem:[%s10 + $0x38] sm:$0xff]
    %v391 = vld [vmem:[%s11] sm:$0x1]
    %v392 = vld [vmem:[%s6] sm:$0xff]
    %v393 = vld [vmem:[%s6 + $0x8] sm:$0xff]
    %v394 = vld [vmem:[%s6 + $0x10] sm:$0xff]
    %v395 = vld [vmem:[%s6 + $0x18] sm:$0xff]
    %v396 = vmul.f32 %v392, %v392
    %v397 = vmul.f32 %v393, %v393
    %v398 = vmul.f32 %v394, %v394
    %v399 = vmul.f32 %v395, %v395
    %v400 = vsel %vm115, %v396, 0.0
    %v401 = vsel %vm115, %v397, 0.0
    %v402 = vadd.f32 %v400, %v401
    %v403 = vsel %vm115, %v398, 0.0
    %v404 = vadd.f32 %v402, %v403
    %v405 = vsel %vm115, %v399, 0.0
    %v406 = vadd.f32 %v404, %v405
    %407 = vadd.xlane.f32.xlu0 %v406
    %v408 = vpop.xlane.xlu0 %407
    %v409 = vrot.slane %v408, 4
    %v410 = vadd.f32 %v408, %v409
    %v411 = vrot.slane %v410, 2
    %v412 = vadd.f32 %v410, %v411
    %v413 = vrot.slane %v412, 1
    %v414 = vadd.f32 %v412, %v413
    %s415 = vtos %v414
    %v416 = vld [vmem:[%s7] sm:$0x1]
    %v417 = vmul.f32 %v416, %v416
    %vm418 = vcmask 253952
    %v419 = vsel %vm418, %v417, 0.0
    %420 = vadd.xlane.f32.xlu0 %v419
    %v421 = vpop.xlane.xlu0 %420
    %v422 = vrot.slane %v421, 4
    %v423 = vadd.f32 %v421, %v422
    %v424 = vrot.slane %v423, 2
    %v425 = vadd.f32 %v423, %v424
    %v426 = vrot.slane %v425, 1
    %v427 = vadd.f32 %v425, %v426
    %s428 = vtos %v427
    %s429 = sadd.f32 %s415, %s428
    %s430 = sld [smem:[#allocation2]]
    %s431 = smul.f32 %s429, %s430
    %s432 = sld [smem:[#allocation6]]
    %s433 = sadd.f32 %s431, %s432
    %v434 = vld [vmem:[%s8] sm:$0xff]
    %v435 = vld [vmem:[%s8 + $0x8] sm:$0xff]
    %v436 = vld [vmem:[%s8 + $0x10] sm:$0xff]
    %v437 = vld [vmem:[%s8 + $0x18] sm:$0xff]
    %v438 = vmul.f32 %v434, %v434
    %v439 = vmul.f32 %v435, %v435
    %v440 = vmul.f32 %v436, %v436
    %v441 = vmul.f32 %v437, %v437
    %v442 = vsel %vm115, %v438, 0.0
    %v443 = vsel %vm115, %v439, 0.0
    %v444 = vadd.f32 %v442, %v443
    %v445 = vsel %vm115, %v440, 0.0
    %v446 = vadd.f32 %v444, %v445
    %v447 = vsel %vm115, %v441, 0.0
    %v448 = vadd.f32 %v446, %v447
    %449 = vadd.xlane.f32.xlu0 %v448
    %v450 = vpop.xlane.xlu0 %449
    %v451 = vrot.slane %v450, 4
    %v452 = vadd.f32 %v450, %v451
    %v453 = vrot.slane %v452, 2
    %v454 = vadd.f32 %v452, %v453
    %v455 = vrot.slane %v454, 1
    %v456 = vadd.f32 %v454, %v455
    %s457 = vtos %v456
    %v458 = vld [vmem:[%s9] sm:$0x1]
    %v459 = vmul.f32 %v458, %v458
    %v460 = vsel %vm418, %v459, 0.0
    %461 = vadd.xlane.f32.xlu0 %v460
    %v462 = vpop.xlane.xlu0 %461
    %v463 = vrot.slane %v462, 4
    %v464 = vadd.f32 %v462, %v463
    %v465 = vrot.slane %v464, 2
    %v466 = vadd.f32 %v464, %v465
    %v467 = vrot.slane %v466, 1
    %v468 = vadd.f32 %v466, %v467
    %s469 = vtos %v468
    %s470 = sadd.f32 %s457, %s469
    %s471 = sld [smem:[#allocation2 + $0x1]]
    %s472 = smul.f32 %s470, %s471
    %s473 = sadd.f32 %s433, %s472
    %s474 = sld [smem:[#allocation6 + $0x1]]
    %s475 = sadd.f32 %s473, %s474
    %v476 = vmul.f32 %v383, %v383
    %v477 = vmul.f32 %v384, %v384
    %v478 = vmul.f32 %v385, %v385
    %v479 = vmul.f32 %v386, %v386
    %v480 = vmul.f32 %v387, %v387
    %v481 = vmul.f32 %v388, %v388
    %v482 = vmul.f32 %v389, %v389
    %v483 = vmul.f32 %v390, %v390
    %vm484 = vcmask 130048
    %v485 = vsel %vm484, %v476, 0.0
    %v486 = vsel %vm484, %v477, 0.0
    %v487 = vadd.f32 %v485, %v486
    %v488 = vsel %vm484, %v478, 0.0
    %v489 = vadd.f32 %v487, %v488
    %v490 = vsel %vm484, %v479, 0.0
    %v491 = vadd.f32 %v489, %v490
    %v492 = vsel %vm484, %v480, 0.0
    %v493 = vadd.f32 %v491, %v492
    %v494 = vsel %vm484, %v481, 0.0
    %v495 = vadd.f32 %v493, %v494
    %v496 = vsel %vm484, %v482, 0.0
    %v497 = vadd.f32 %v495, %v496
    %v498 = vsel %vm484, %v483, 0.0
    %v499 = vadd.f32 %v497, %v498
    %500 = vadd.xlane.f32.xlu0 %v499
    %v501 = vpop.xlane.xlu0 %500
    %v502 = vrot.slane %v501, 4
    %v503 = vadd.f32 %v501, %v502
    %v504 = vrot.slane %v503, 2
    %v505 = vadd.f32 %v503, %v504
    %v506 = vrot.slane %v505, 1
    %v507 = vadd.f32 %v505, %v506
    %s508 = vtos %v507
    %v509 = vmul.f32 %v391, %v391
    %vm510 = vcmask 122880
    %v511 = vsel %vm510, %v509, 0.0
    %512 = vadd.xlane.f32.xlu0 %v511
    %v513 = vpop.xlane.xlu0 %512
    %v514 = vrot.slane %v513, 4
    %v515 = vadd.f32 %v513, %v514
    %v516 = vrot.slane %v515, 2
    %v517 = vadd.f32 %v515, %v516
    %v518 = vrot.slane %v517, 1
    %v519 = vadd.f32 %v517, %v518
    %s520 = vtos %v519
    %s521 = sadd.f32 %s508, %s520
    %s522 = sld [smem:[#allocation2 + $0x2]]
    %s523 = smul.f32 %s521, %s522
    %s524 = sadd.f32 %s475, %s523
    %s525 = sld [smem:[#allocation6 + $0x2]]
    %s526 = sadd.f32 %s524, %s525
    %535 = vrot.lane.b32.xlu0 %v476, 112
    %v536 = vpop.permute.xlu0 %535
    %537 = vrot.lane.b32.xlu0 %v477, 112
    %v538 = vpop.permute.xlu0 %537
    %539 = vrot.lane.b32.xlu0 %v478, 112
    %v540 = vpop.permute.xlu0 %539
    %541 = vrot.lane.b32.xlu0 %v479, 112
    %v542 = vpop.permute.xlu0 %541
    %543 = vrot.lane.b32.xlu0 %v480, 112
    %v544 = vpop.permute.xlu0 %543
    %545 = vrot.lane.b32.xlu0 %v481, 112
    %v546 = vpop.permute.xlu0 %545
    %547 = vrot.lane.b32.xlu0 %v482, 112
    %v548 = vpop.permute.xlu0 %547
    %549 = vrot.lane.b32.xlu0 %v483, 112
    %v550 = vpop.permute.xlu0 %549
    %v559 = vsel %vm484, %v536, 0.0
    %v560 = vsel %vm484, %v538, 0.0
    %v561 = vadd.f32 %v559, %v560
    %v562 = vsel %vm484, %v540, 0.0
    %v563 = vadd.f32 %v561, %v562
    %v564 = vsel %vm484, %v542, 0.0
    %v565 = vadd.f32 %v563, %v564
    %v566 = vsel %vm484, %v544, 0.0
    %v567 = vadd.f32 %v565, %v566
    %v568 = vsel %vm484, %v546, 0.0
    %v569 = vadd.f32 %v567, %v568
    %v570 = vsel %vm484, %v548, 0.0
    %v571 = vadd.f32 %v569, %v570
    %v572 = vsel %vm484, %v550, 0.0
    %v573 = vadd.f32 %v571, %v572
    %574 = vadd.xlane.f32.xlu0 %v573
    %v575 = vpop.xlane.xlu0 %574
    %v576 = vrot.slane %v575, 4
    %v577 = vadd.f32 %v575, %v576
    %v578 = vrot.slane %v577, 2
    %v579 = vadd.f32 %v577, %v578
    %v580 = vrot.slane %v579, 1
    %v581 = vadd.f32 %v579, %v580
    %s582 = vtos %v581
    %v584 = vlaneseq
    %v585 = vshrl.u32 %v584, 7
    %v586 = vsub.s32 0, %v585
    %v587 = vrot.slane %v509, %v586
    %588 = vrot.lane.b32.xlu0 %v587, 112
    %v589 = vpop.permute.xlu0 %588
    %v591 = vsel %vm510, %v589, 0.0
    %592 = vadd.xlane.f32.xlu0 %v591
    %v593 = vpop.xlane.xlu0 %592
    %v594 = vrot.slane %v593, 4
    %v595 = vadd.f32 %v593, %v594
    %v596 = vrot.slane %v595, 2
    %v597 = vadd.f32 %v595, %v596
    %v598 = vrot.slane %v597, 1
    %v599 = vadd.f32 %v597, %v598
    %s600 = vtos %v599
    %s601 = sadd.f32 %s582, %s600
    %s602 = sld [smem:[#allocation2 + $0x3]]
    %s603 = smul.f32 %s601, %s602
    %s604 = sadd.f32 %s526, %s603
    %s605 = sld [smem:[#allocation6 + $0x3]]
    %s606 = sadd.f32 %s604, %s605
    %s607 = scalar_lea.smem [#allocation9], 0
    %608 = sst [smem:[%s607]] %s606
    // Predicated region
    $region58: #{tpu_custom_call.1} parent=1 // pred_check
      _
    $region59: #{tpu_custom_call.1} parent=1 // pred_check_branch
      %610 = sbr.rel (0) target = $region61
    $region60: #{tpu_custom_call.1} parent=1 // pred_region
      %s612 = ssub.s32 128, 128
      %613 = vsyncadd [#allocation3], %s612
      %s615 = sshll.u32 [#allocation8], 4
      %s616 = int_to_ptr.vmem [resolvable:$true] %s615
      %618 = dma.vmem_to_hbm [thread:$0]  %s616, 128, %s12, [#allocation3]
    $region61: #{tpu_custom_call.1} parent=1 // pred_fallthru
      _
    // Predicated region
    $region62: #{tpu_custom_call.1} parent=1 // pred_check
      _
    $region63: #{tpu_custom_call.1} parent=1 // pred_check_branch
      %620 = sbr.rel (0) target = $region65
    $region64: #{tpu_custom_call.1} parent=1 // pred_region
      %s622 = ssub.s32 16, 16
      %623 = vsyncadd [#allocation4], %s622
      %626 = dma.smem_to_hbm [#allocation9], 16, %s13, [#allocation4]
    $region65: #{tpu_custom_call.1} parent=1 // pred_fallthru
      _
    // Predicated region
    $region66: #{tpu_custom_call.1} parent=1 // pred_check
      _
    $region67: #{tpu_custom_call.1} parent=1 // pred_check_branch
      %628 = sbr.rel (0) target = $region69
    $region68: #{tpu_custom_call.1} parent=1 // pred_region
      %629 = dma.done [#allocation3], 128
    $region69: #{tpu_custom_call.1} parent=1 // pred_fallthru
      _
    // Predicated region
    $region70: #{tpu_custom_call.1} parent=1 // pred_check
      _
    $region71: #{tpu_custom_call.1} parent=1 // pred_check_branch
      %631 = sbr.rel (0) target = $region73
    $region72: #{tpu_custom_call.1} parent=1 // pred_region
      %632 = dma.done [#allocation4], 16
    $region73: #{tpu_custom_call.1} parent=1 // pred_fallthru
      _
    %633 = sfence
    %634 = vsyncpa [#allocation3], 1
    %635 = vsyncpa [#allocation4], 1
    %636 = vsyncpa [#allocation5], 1
    %637 = vsyncpa [#allocation7], 1

</llo_original>
